<compile_context>
chip_gen: v6e
topology: v6e:2x2x1
jax: 0.10.0
libtpu: 0.0.40
codegen_flags: <defaults>
</compile_context>

<pallas_src>
import jax
import jax.numpy as jnp
from jax.experimental import pallas as pl
from jax.experimental.pallas import tpu as pltpu

_LANE = 128


def _round_up(x: int, m: int) -> int:
    return ((x + m - 1) // m) * m


def _value_kernel(x_ref, w1_ref, b1_ref, w2_ref, o_ref):
    # x_ref:  [TB, S]   activation tile (pipelined over the batch grid axis)
    # w1_ref: [S, 128]  VMEM-resident (constant index map)
    # b1_ref: [1, 128]
    # w2_ref: [1, 128]  second-layer weights laid out as a row
    # o_ref:  [1, TB]   lane-dense output row for this grid step
    x = x_ref[...]
    # Layer 1 on the MXU, f32 accumulation (bf16 state is upcast by promotion).
    h = jnp.dot(x, w1_ref[...], preferred_element_type=jnp.float32)
    h = jnp.maximum(h + b1_ref[...], 0.0)          # fused bias + ReLU (VPU, f32)
    # Layer 2 as an "NT" matmul contracting both hidden axes:
    #   [1, 128] . [TB, 128]^T -> [1, TB]  (lane-dense result -> unmasked stores)
    out_row = jax.lax.dot_general(
        w2_ref[...], h,
        dimension_numbers=(((1,), (1,)), ((), ())),
        preferred_element_type=jnp.float32)
    o_ref[...] = out_row.astype(o_ref.dtype)


def _choose_batch_tile(B, S, H, state_itemsize, vmem_budget_bytes, block_b):
    """Pick a lane-aligned batch tile that fits the VMEM budget."""
    lanes_s = max(_round_up(S, _LANE), _LANE)           # lane padding of state tile
    per_row_bytes = (2 * lanes_s * state_itemsize       # double-buffered state tile
                     + H * 4                            # f32 hidden intermediate
                     + 2 * 4)                           # double-buffered output row
    weight_bytes = 2 * (_round_up(S, 8) * H * 4 + 2 * 8 * H * 4)
    avail = max(vmem_budget_bytes - weight_bytes, 4 << 20)

    if block_b is None:
        tb = (avail // per_row_bytes) // _LANE * _LANE
        tb = max(_LANE, min(tb, 8192))
    else:
        tb = max(_LANE, _round_up(block_b, _LANE))

    b_aligned = _round_up(B, _LANE)
    if b_aligned <= tb:
        if B >= 2 * _LANE:
            # Whole batch would fit a single tile: split into 2 grid steps so
            # both v7x TensorCores ("parallel" axis) have work.
            tb = _round_up(pl.cdiv(B, 2), _LANE)
        else:
            tb = b_aligned
    return tb, lanes_s, weight_bytes


def value_estimator_forward(state, w1, b1, w2, b2, *, block_b=None,
                            vmem_budget_bytes=40 * 1024 * 1024):
    """Forward pass of ValueEstimator.

    state: [B, S] f32 or bf16 (bf16 is exact for one-hot observations)
    w1:    [S, 128]   (already transposed to [in, out])
    b1:    [128]
    w2:    [128, 1]
    b2:    [1]
    returns [B, 1] f32
    """
    B, S = state.shape
    H = w1.shape[1]
    state_itemsize = jnp.dtype(state.dtype).itemsize

    tb, lanes_s, weight_bytes = _choose_batch_tile(
        B, S, H, state_itemsize, vmem_budget_bytes, block_b)

    padded_b = _round_up(B, tb)
    ngrid = padded_b // tb
    if padded_b != B:
        state = jnp.pad(state, ((0, padded_b - B), (0, 0)))

    b1_2d = b1.reshape(1, H)
    w2_row = w2.reshape(1, H)      # [128, 1] -> [1, 128]

    # Explicit VMEM limit (v7x physical cap is 64 MiB/TC; v5e scoped default
    # is only 16 MiB, so raise it there too).
    est_vmem = (2 * tb * lanes_s * state_itemsize      # state double buffer
                + tb * H * 4                           # hidden intermediate
                + 2 * 8 * tb * 4                       # output row double buffer
                + weight_bytes)
    vmem_limit = int(min(max(est_vmem + (8 << 20), 32 << 20), 64 << 20))

    cost = pl.CostEstimate(
        flops=2 * padded_b * H * (S + 1) + 2 * padded_b * H,
        transcendentals=0,
        bytes_accessed=(padded_b * S * state_itemsize   # state read
                        + S * H * 4 + 2 * H * 4         # weights / bias
                        + padded_b * 4),                # output write
    )

    out_rows = pl.pallas_call(
        _value_kernel,
        out_shape=jax.ShapeDtypeStruct((ngrid, tb), jnp.float32),
        grid=(ngrid,),
        in_specs=[
            pl.BlockSpec((tb, S), lambda i: (i, 0)),   # state: tiled over batch
            pl.BlockSpec((S, H), lambda i: (0, 0)),    # w1: resident
            pl.BlockSpec((1, H), lambda i: (0, 0)),    # b1: resident
            pl.BlockSpec((1, H), lambda i: (0, 0)),    # w2 row: resident
        ],
        out_specs=pl.BlockSpec((1, tb), lambda i: (i, 0)),   # lane-dense row
        compiler_params=pltpu.CompilerParams(
            dimension_semantics=("parallel",),
            vmem_limit_bytes=vmem_limit),
        cost_estimate=cost,
    )(state, w1, b1_2d, w2_row)

    out = out_rows.reshape(padded_b)[:B].reshape(B, 1)
    return out + b2.reshape(1, 1)          # b2 folded into the wrapper


def init_params(key, num_state_space, hidden=128):
    """Deterministic init mimicking PyTorch nn.Linear default (uniform +/- 1/sqrt(fan_in))."""
    k1, k2, k3, k4 = jax.random.split(key, 4)
    bound1 = 1.0 / jnp.sqrt(num_state_space)
    bound2 = 1.0 / jnp.sqrt(hidden)
    # Stored already transposed: [in, out].
    w1 = jax.random.uniform(k1, (num_state_space, hidden), jnp.float32,
                            -bound1, bound1)
    b1 = jax.random.uniform(k2, (hidden,), jnp.float32, -bound1, bound1)
    w2 = jax.random.uniform(k3, (hidden, 1), jnp.float32, -bound2, bound2)
    b2 = jax.random.uniform(k4, (1,), jnp.float32, -bound2, bound2)
    return w1, b1, w2, b2


def _reference(state, w1, b1, w2, b2):
    sf = state.astype(jnp.float32)
    return jnp.maximum(sf @ w1 + b1, 0.0) @ w2 + b2


if __name__ == "__main__":
    key = jax.random.PRNGKey(0)
    num_state_space = 32

    kp, kx1, kx2 = jax.random.split(key, 3)
    w1, b1, w2, b2 = init_params(kp, num_state_space)

    # Case 1: tiny batch (tail / clamp path, single grid step).
    batch1 = 8
    ids1 = jax.random.randint(kx1, (batch1,), 0, num_state_space)
    state1 = jax.nn.one_hot(ids1, num_state_space, dtype=jnp.bfloat16)  # bf16 stream, exact for one-hot
    out1 = jax.block_until_ready(value_estimator_forward(state1, w1, b1, w2, b2))
    ref1 = _reference(state1, w1, b1, w2, b2)
    assert out1.shape == (batch1, 1)
    assert jnp.allclose(out1, ref1, atol=1e-5, rtol=1e-5)

    # Case 2: batch big enough to exercise the >=2-step grid + padding path.
    batch2 = 300
    ids2 = jax.random.randint(kx2, (batch2,), 0, num_state_space)
    state2 = jax.nn.one_hot(ids2, num_state_space, dtype=jnp.bfloat16)
    out2 = jax.block_until_ready(value_estimator_forward(state2, w1, b1, w2, b2))
    ref2 = _reference(state2, w1, b1, w2, b2)
    assert out2.shape == (batch2, 1)
    assert jnp.allclose(out2, ref2, atol=1e-5, rtol=1e-5)

    print("KERNEL_OK")
</pallas_src>

<mosaic_0001>
module attributes {stable_mosaic.version = 11 : i64} {
  func.func @_value_kernel(%arg0: i32, %arg1: memref<128x32xbf16, #tpu.memory_space<vmem>>, %arg2: memref<32x128xf32, #tpu.memory_space<vmem>>, %arg3: memref<1x128xf32, #tpu.memory_space<vmem>>, %arg4: memref<1x128xf32, #tpu.memory_space<vmem>>, %arg5: memref<1x128xf32, #tpu.memory_space<vmem>>) attributes {dimension_semantics = [#tpu.dimension_semantics<parallel>], iteration_bounds = array<i64: 1>, scalar_prefetch = 0 : i64, scratch_operands = 0 : i64, tpu.core_type = #tpu.core_type<tc>, window_params = [{transform_indices = @transform_0, window_bounds = array<i64: 128, 32>}, {pipeline_mode = #tpu.pipeline_mode<synchronous>, transform_indices = @transform_1, window_bounds = array<i64: 32, 128>}, {pipeline_mode = #tpu.pipeline_mode<synchronous>, transform_indices = @transform_2, window_bounds = array<i64: 1, 128>}, {pipeline_mode = #tpu.pipeline_mode<synchronous>, transform_indices = @transform_3, window_bounds = array<i64: 1, 128>}, {transform_indices = @transform_4, window_bounds = array<i64: 1, 128>}]} {
    %c0 = arith.constant 0 : index
    %c0_0 = arith.constant 0 : index
    %0 = vector.load %arg1[%c0, %c0_0] : memref<128x32xbf16, #tpu.memory_space<vmem>>, vector<128x32xbf16>
    %c0_1 = arith.constant 0 : index
    %c0_2 = arith.constant 0 : index
    %1 = vector.load %arg2[%c0_1, %c0_2] : memref<32x128xf32, #tpu.memory_space<vmem>>, vector<32x128xf32>
    %cst = arith.constant dense<0.000000e+00> : vector<128x128xf32>
    %2 = tpu.matmul %0, %1, %cst {dimension_numbers = #tpu.dot_dimension_numbers<[1], [0], [0], [1], [0, 0, 1, 1], [], []>} : vector<128x32xbf16>, vector<32x128xf32>, vector<128x128xf32> -> vector<128x128xf32>
    %c0_3 = arith.constant 0 : index
    %c0_4 = arith.constant 0 : index
    %3 = vector.load %arg3[%c0_3, %c0_4] : memref<1x128xf32, #tpu.memory_space<vmem>>, vector<1x128xf32>
    %4 = vector.broadcast %3 : vector<1x128xf32> to vector<128x128xf32>
    %5 = arith.addf %2, %4 : vector<128x128xf32>
    %cst_5 = arith.constant 0.000000e+00 : f32
    %6 = vector.broadcast %cst_5 : f32 to vector<128x128xf32>
    %7 = arith.maximumf %5, %6 : vector<128x128xf32>
    %c0_6 = arith.constant 0 : index
    %c0_7 = arith.constant 0 : index
    %8 = vector.load %arg4[%c0_6, %c0_7] : memref<1x128xf32, #tpu.memory_space<vmem>>, vector<1x128xf32>
    %cst_8 = arith.constant dense<0.000000e+00> : vector<1x128xf32>
    %9 = tpu.matmul %8, %7, %cst_8 {dimension_numbers = #tpu.dot_dimension_numbers<[1], [1], [0], [0], [0, 0, 1, 0], [], []>} : vector<1x128xf32>, vector<128x128xf32>, vector<1x128xf32> -> vector<1x128xf32>
    %c0_9 = arith.constant 0 : index
    %c0_10 = arith.constant 0 : index
    %10 = vector.load %arg5[%c0_9, %c0_10] : memref<1x128xf32, #tpu.memory_space<vmem>>, vector<1x128xf32>
    tpu.vector_store %arg5[%c0_9, %c0_10], %9 {strides = array<i32>} : memref<1x128xf32, #tpu.memory_space<vmem>>, vector<1x128xf32>,
    return
  }
  func.func @transform_0(%arg0: i32) -> (i32, i32) {
    %c0_i32 = arith.constant 0 : i32
    %c0_i32_0 = arith.constant 0 : i32
    return %arg0, %c0_i32 : i32, i32
  }
  func.func @transform_1(%arg0: i32) -> (i32, i32) {
    %c0_i32 = arith.constant 0 : i32
    %c0_i32_0 = arith.constant 0 : i32
    %c0_i32_1 = arith.constant 0 : i32
    return %c0_i32, %c0_i32_0 : i32, i32
  }
  func.func @transform_2(%arg0: i32) -> (i32, i32) {
    %c0_i32 = arith.constant 0 : i32
    %c0_i32_0 = arith.constant 0 : i32
    %c0_i32_1 = arith.constant 0 : i32
    return %c0_i32, %c0_i32_0 : i32, i32
  }
  func.func @transform_3(%arg0: i32) -> (i32, i32) {
    %c0_i32 = arith.constant 0 : i32
    %c0_i32_0 = arith.constant 0 : i32
    %c0_i32_1 = arith.constant 0 : i32
    return %c0_i32, %c0_i32_0 : i32, i32
  }
  func.func @transform_4(%arg0: i32) -> (i32, i32) {
    %c0_i32 = arith.constant 0 : i32
    %c0_i32_0 = arith.constant 0 : i32
    return %arg0, %c0_i32 : i32, i32
  }
}

</mosaic_0001>

<llo_original>
// kernel: tpu_custom_call.1
$region0: #{tpu_custom_call.1}
  #allocation0 [shape = 'u32[]', space=smem, size = 0x4, offset = 0x4, fixed_abs, tag = 'smem constant byte address 0x4 - core index']
  #allocation1 [shape = 'u32[144,128]{1,0:T(1,128)}', space=vmem, size = 0x12000, scoped, tag = 'internal scratch']
  %s0 = inlined_call_operand.vmem [shape: bf16[128,32], index: 0, kind: input, shape index: {}]
  %s1 = inlined_call_operand.vmem [shape: f32[32,128], index: 1, kind: input, shape index: {}]
  %s2 = inlined_call_operand.vmem [shape: f32[1,128], index: 2, kind: input, shape index: {}]
  %s3 = inlined_call_operand.vmem [shape: f32[1,128], index: 3, kind: input, shape index: {}]
  %s4 = inlined_call_operand.hbm [shape: f32[1,128], index: 4, kind: output, shape index: {}]
  %s5 = sld [smem:[#allocation0]]
  $region26: #{tpu_custom_call.1} parent=0
    _
  %s7 = ssub.s32 1, %s5
  %s8 = scalar_select 0, %s7, %s5
  $region1: #{tpu_custom_call.1} parent=0
    #allocation2 [shape = 'u8[512]{0}', space=vmem, size = 0x400, scoped, tag = 'output window, operand 0, single buffered']
    #allocation3 [shape = 's32[1]{0}', space=sflag, size = 0x4, scoped, tag = 'scoped memory for tpu_custom_call.1']
    %9 = vsyncpa [#allocation3], 0
    // Predicated region
    $region2: #{tpu_custom_call.1} parent=1 // pred_check
      _
    $region3: #{tpu_custom_call.1} parent=1 // pred_check_branch
      %11 = sbr.rel (0) target = $region5
    $region4: #{tpu_custom_call.1} parent=1 // pred_region
      _
    $region5: #{tpu_custom_call.1} parent=1 // pred_fallthru
      _
    // Predicated region
    $region6: #{tpu_custom_call.1} parent=1 // pred_check
      _
    $region7: #{tpu_custom_call.1} parent=1 // pred_check_branch
      %13 = sbr.rel (0) target = $region9
    $region8: #{tpu_custom_call.1} parent=1 // pred_region
      _
    $region9: #{tpu_custom_call.1} parent=1 // pred_fallthru
      _
    // Predicated region
    $region10: #{tpu_custom_call.1} parent=1 // pred_check
      _
    $region11: #{tpu_custom_call.1} parent=1 // pred_check_branch
      %15 = sbr.rel (0) target = $region13
    $region12: #{tpu_custom_call.1} parent=1 // pred_region
      _
    $region13: #{tpu_custom_call.1} parent=1 // pred_fallthru
      _
    // Predicated region
    $region14: #{tpu_custom_call.1} parent=1 // pred_check
      _
    $region15: #{tpu_custom_call.1} parent=1 // pred_check_branch
      %17 = sbr.rel (0) target = $region17
    $region16: #{tpu_custom_call.1} parent=1 // pred_region
      _
    $region17: #{tpu_custom_call.1} parent=1 // pred_fallthru
      _
    %v19 = vld [vmem:[%s0] sm:$0xf]
    %v20 = vld [vmem:[%s0 + $0x4] sm:$0xf]
    %v21 = vld [vmem:[%s0 + $0x8] sm:$0xf]
    %v22 = vld [vmem:[%s0 + $0xc] sm:$0xf]
    %v23 = vld [vmem:[%s0 + $0x10] sm:$0xf]
    %v24 = vld [vmem:[%s0 + $0x14] sm:$0xf]
    %v25 = vld [vmem:[%s0 + $0x18] sm:$0xf]
    %v26 = vld [vmem:[%s0 + $0x1c] sm:$0xf]
    %v27 = vld [vmem:[%s0 + $0x20] sm:$0xf]
    %v28 = vld [vmem:[%s0 + $0x24] sm:$0xf]
    %v29 = vld [vmem:[%s0 + $0x28] sm:$0xf]
    %v30 = vld [vmem:[%s0 + $0x2c] sm:$0xf]
    %v31 = vld [vmem:[%s0 + $0x30] sm:$0xf]
    %v32 = vld [vmem:[%s0 + $0x34] sm:$0xf]
    %v33 = vld [vmem:[%s0 + $0x38] sm:$0xf]
    %v34 = vld [vmem:[%s0 + $0x3c] sm:$0xf]
    %v35 = vld [vmem:[%s1] sm:$0xff]
    %v36 = vld [vmem:[%s1 + $0x8] sm:$0xff]
    %v37 = vld [vmem:[%s1 + $0x10] sm:$0xff]
    %v38 = vld [vmem:[%s1 + $0x18] sm:$0xff]
    %v39 = vld [vmem:[%s2] sm:$0x1]
    %v41 = vlaneseq
    %v42 = vshrl.u32 %v41, 7
    %v43 = vsub.s32 0, %v42
    %v44 = vrot.slane %v39, %v43
    %v62 = vunpack.c.l.b16 %v19
    %v63 = vunpack.c.l.b16 %v20
    %v64 = vunpack.c.l.b16 %v21
    %v65 = vunpack.c.l.b16 %v22
    %v66 = vunpack.c.l.b16 %v23
    %v67 = vunpack.c.l.b16 %v24
    %v68 = vunpack.c.l.b16 %v25
    %v69 = vunpack.c.l.b16 %v26
    %v70 = vunpack.c.l.b16 %v27
    %v71 = vunpack.c.l.b16 %v28
    %v72 = vunpack.c.l.b16 %v29
    %v73 = vunpack.c.l.b16 %v30
    %v74 = vunpack.c.l.b16 %v31
    %v75 = vunpack.c.l.b16 %v32
    %v76 = vunpack.c.l.b16 %v33
    %v77 = vunpack.c.l.b16 %v34
    %v78 = vpack.c.b16 %v63, %v62
    %v79 = vpack.c.b16 %v65, %v64
    %v80 = vpack.c.b16 %v67, %v66
    %v81 = vpack.c.b16 %v69, %v68
    %v82 = vpack.c.b16 %v71, %v70
    %v83 = vpack.c.b16 %v73, %v72
    %v84 = vpack.c.b16 %v75, %v74
    %v85 = vpack.c.b16 %v77, %v76
    %vm86 = vcmask 261120
    %v88 = vsel %vm86, %v78, 0
    %v91 = vsel %vm86, %v79, 0
    %v94 = vsel %vm86, %v80, 0
    %v97 = vsel %vm86, %v81, 0
    %v100 = vsel %vm86, %v82, 0
    %v103 = vsel %vm86, %v83, 0
    %v106 = vsel %vm86, %v84, 0
    %v109 = vsel %vm86, %v85, 0
    %111 = vmatprep.subr.mxu0 0.0
    %112 = vmatpush1.msra.mxu0 0.0
    %113 = vmatprep.subr.mxu0 0.0
    %114 = vmatpush1.msra.mxu0 0.0
    %115 = vmatprep.subr.mxu0 0.0
    %116 = vmatpush1.msra.mxu0 0.0
    %117 = vmatprep.subr.mxu0 0.0
    %118 = vmatpush1.msra.mxu0 0.0
    %119 = vmatprep.subr.mxu0 0.0
    %120 = vmatpush1.msra.mxu0 0.0
    %121 = vmatprep.subr.mxu0 0.0
    %122 = vmatpush1.msra.mxu0 0.0
    %123 = vmatprep.subr.mxu0 0.0
    %124 = vmatpush1.msra.mxu0 0.0
    %125 = vmatprep.subr.mxu0 0.0
    %126 = vmatpush1.msra.mxu0 0.0
    %127 = vmatprep.subr.mxu0 0.0
    %128 = vmatpush1.msra.mxu0 0.0
    %129 = vmatprep.subr.mxu0 0.0
    %130 = vmatpush1.msra.mxu0 0.0
    %131 = vmatprep.subr.mxu0 0.0
    %132 = vmatpush1.msra.mxu0 0.0
    %133 = vmatprep.subr.mxu0 0.0
    %134 = vmatpush1.msra.mxu0 0.0
    %135 = vmatprep.subr.mxu0 0.0
    %136 = vmatpush1.msra.mxu0 %v38
    %137 = vmatprep.subr.mxu0 0.0
    %138 = vmatpush1.msra.mxu0 %v37
    %139 = vmatprep.subr.mxu0 0.0
    %140 = vmatpush1.msra.mxu0 %v36
    %141 = vmatprep.subr.mxu0 0.0
    %142 = vmatpush1.msra.mxu0 %v35
    %143 = vmatprep.subr.mxu0 0.0
    %144 = vmatpush2.msra.mxu0 0.0
    %145 = vmatprep.subr.mxu0 0.0
    %146 = vmatpush2.msra.mxu0 0.0
    %147 = vmatprep.subr.mxu0 0.0
    %148 = vmatpush2.msra.mxu0 0.0
    %149 = vmatprep.subr.mxu0 0.0
    %150 = vmatpush2.msra.mxu0 0.0
    %151 = vmatprep.subr.mxu0 0.0
    %152 = vmatpush2.msra.mxu0 0.0
    %153 = vmatprep.subr.mxu0 0.0
    %154 = vmatpush2.msra.mxu0 0.0
    %155 = vmatprep.subr.mxu0 0.0
    %156 = vmatpush2.msra.mxu0 0.0
    %157 = vmatprep.subr.mxu0 0.0
    %158 = vmatpush2.msra.mxu0 0.0
    %159 = vmatprep.subr.mxu0 0.0
    %160 = vmatpush2.msra.mxu0 0.0
    %161 = vmatprep.subr.mxu0 0.0
    %162 = vmatpush2.msra.mxu0 0.0
    %163 = vmatprep.subr.mxu0 0.0
    %164 = vmatpush2.msra.mxu0 0.0
    %165 = vmatprep.subr.mxu0 0.0
    %166 = vmatpush2.msra.mxu0 0.0
    %167 = vmatprep.subr.mxu0 0.0
    %168 = vmatpush2.msra.mxu0 0.0
    %169 = vmatprep.subr.mxu0 0.0
    %170 = vmatpush2.msra.mxu0 0.0
    %171 = vmatprep.subr.mxu0 0.0
    %172 = vmatpush2.msra.mxu0 0.0
    %173 = vmatprep.subr.mxu0 0.0
    %174 = vmatpush2.msra.mxu0 0.0
    %175 = vmatprep.mubr.bf16.mxu0 0
    %176 = vmatmul.mubr.bf16.gmra.mxu0 %v88
    %v177 = vpop.f32.mrf.mxu0
    %v178 = vadd.f32 %v44, %v177
    %v179 = vpop.f32.mrf.mxu0
    %v180 = vpop.f32.mrf.mxu0
    %v181 = vadd.f32 %v44, %v180
    %v182 = vpop.f32.mrf.mxu0
    %183 = vmatprep.mubr.bf16.mxu0 0
    %184 = vmatmul.mubr.bf16.gmra.mxu0 %v91
    %v185 = vpop.f32.mrf.mxu0
    %v186 = vadd.f32 %v44, %v185
    %v187 = vpop.f32.mrf.mxu0
    %v188 = vpop.f32.mrf.mxu0
    %v189 = vadd.f32 %v44, %v188
    %v190 = vpop.f32.mrf.mxu0
    %191 = vmatprep.mubr.bf16.mxu0 0
    %192 = vmatmul.mubr.bf16.gmra.mxu0 %v94
    %v193 = vpop.f32.mrf.mxu0
    %v194 = vadd.f32 %v44, %v193
    %v195 = vpop.f32.mrf.mxu0
    %v196 = vpop.f32.mrf.mxu0
    %v197 = vadd.f32 %v44, %v196
    %v198 = vpop.f32.mrf.mxu0
    %199 = vmatprep.mubr.bf16.mxu0 0
    %200 = vmatmul.mubr.bf16.gmra.mxu0 %v97
    %v201 = vpop.f32.mrf.mxu0
    %v202 = vadd.f32 %v44, %v201
    %v203 = vpop.f32.mrf.mxu0
    %v204 = vpop.f32.mrf.mxu0
    %v205 = vadd.f32 %v44, %v204
    %v206 = vpop.f32.mrf.mxu0
    %207 = vmatprep.mubr.bf16.mxu0 0
    %208 = vmatmul.mubr.bf16.gmra.mxu0 %v100
    %v209 = vpop.f32.mrf.mxu0
    %v210 = vadd.f32 %v44, %v209
    %v211 = vpop.f32.mrf.mxu0
    %v212 = vpop.f32.mrf.mxu0
    %v213 = vadd.f32 %v44, %v212
    %v214 = vpop.f32.mrf.mxu0
    %215 = vmatprep.mubr.bf16.mxu0 0
    %216 = vmatmul.mubr.bf16.gmra.mxu0 %v103
    %v217 = vpop.f32.mrf.mxu0
    %v218 = vadd.f32 %v44, %v217
    %v219 = vpop.f32.mrf.mxu0
    %v220 = vpop.f32.mrf.mxu0
    %v221 = vadd.f32 %v44, %v220
    %v222 = vpop.f32.mrf.mxu0
    %223 = vmatprep.mubr.bf16.mxu0 0
    %224 = vmatmul.mubr.bf16.gmra.mxu0 %v106
    %v225 = vpop.f32.mrf.mxu0
    %v226 = vadd.f32 %v44, %v225
    %v227 = vpop.f32.mrf.mxu0
    %v228 = vpop.f32.mrf.mxu0
    %v229 = vadd.f32 %v44, %v228
    %v230 = vpop.f32.mrf.mxu0
    %231 = vmatprep.mubr.bf16.mxu0 0
    %232 = vmatmul.mubr.bf16.gmra.mxu0 %v109
    %v233 = vpop.f32.mrf.mxu0
    %v234 = vadd.f32 %v44, %v233
    %v235 = vpop.f32.mrf.mxu0
    %v236 = vpop.f32.mrf.mxu0
    %v237 = vadd.f32 %v44, %v236
    %v238 = vpop.f32.mrf.mxu0
    %239 = vdwg.mxu0
    %v240 = vmax.f32 %v178, 0.0
    %v241 = vmax.f32 %v181, 0.0
    %v242 = vmax.f32 %v186, 0.0
    %v243 = vmax.f32 %v189, 0.0
    %v244 = vmax.f32 %v194, 0.0
    %v245 = vmax.f32 %v197, 0.0
    %v246 = vmax.f32 %v202, 0.0
    %v247 = vmax.f32 %v205, 0.0
    %v248 = vmax.f32 %v210, 0.0
    %v249 = vmax.f32 %v213, 0.0
    %v250 = vmax.f32 %v218, 0.0
    %v251 = vmax.f32 %v221, 0.0
    %v252 = vmax.f32 %v226, 0.0
    %v253 = vmax.f32 %v229, 0.0
    %v254 = vmax.f32 %v234, 0.0
    %v255 = vmax.f32 %v237, 0.0
    %v256 = vld [vmem:[%s3] sm:$0x1]
    %257 = vmatprep.subr.mxu0 0.0
    %258 = vmatpush1.xpose.msra.mxu0 %v255
    %259 = vmatprep.subr.mxu0 0.0
    %260 = vmatpush1.xpose.msra.mxu0 %v254
    %261 = vmatprep.subr.mxu0 0.0
    %262 = vmatpush1.xpose.msra.mxu0 %v253
    %263 = vmatprep.subr.mxu0 0.0
    %264 = vmatpush1.xpose.msra.mxu0 %v252
    %265 = vmatprep.subr.mxu0 0.0
    %266 = vmatpush1.xpose.msra.mxu0 %v251
    %267 = vmatprep.subr.mxu0 0.0
    %268 = vmatpush1.xpose.msra.mxu0 %v250
    %269 = vmatprep.subr.mxu0 0.0
    %270 = vmatpush1.xpose.msra.mxu0 %v249
    %271 = vmatprep.subr.mxu0 0.0
    %272 = vmatpush1.xpose.msra.mxu0 %v248
    %273 = vmatprep.subr.mxu0 0.0
    %274 = vmatpush1.xpose.msra.mxu0 %v247
    %275 = vmatprep.subr.mxu0 0.0
    %276 = vmatpush1.xpose.msra.mxu0 %v246
    %277 = vmatprep.subr.mxu0 0.0
    %278 = vmatpush1.xpose.msra.mxu0 %v245
    %279 = vmatprep.subr.mxu0 0.0
    %280 = vmatpush1.xpose.msra.mxu0 %v244
    %281 = vmatprep.subr.mxu0 0.0
    %282 = vmatpush1.xpose.msra.mxu0 %v243
    %283 = vmatprep.subr.mxu0 0.0
    %284 = vmatpush1.xpose.msra.mxu0 %v242
    %285 = vmatprep.subr.mxu0 0.0
    %286 = vmatpush1.xpose.msra.mxu0 %v241
    %287 = vmatprep.subr.mxu0 0.0
    %288 = vmatpush1.xpose.msra.mxu0 %v240
    %289 = vmatprep.subr.mxu0 0.0
    %290 = vmatpush2.xpose.msra.mxu0 0.0
    %291 = vmatprep.subr.mxu0 0.0
    %292 = vmatpush2.xpose.msra.mxu0 0.0
    %293 = vmatprep.subr.mxu0 0.0
    %294 = vmatpush2.xpose.msra.mxu0 0.0
    %295 = vmatprep.subr.mxu0 0.0
    %296 = vmatpush2.xpose.msra.mxu0 0.0
    %297 = vmatprep.subr.mxu0 0.0
    %298 = vmatpush2.xpose.msra.mxu0 0.0
    %299 = vmatprep.subr.mxu0 0.0
    %300 = vmatpush2.xpose.msra.mxu0 0.0
    %301 = vmatprep.subr.mxu0 0.0
    %302 = vmatpush2.xpose.msra.mxu0 0.0
    %303 = vmatprep.subr.mxu0 0.0
    %304 = vmatpush2.xpose.msra.mxu0 0.0
    %305 = vmatprep.subr.mxu0 0.0
    %306 = vmatpush2.xpose.msra.mxu0 0.0
    %307 = vmatprep.subr.mxu0 0.0
    %308 = vmatpush2.xpose.msra.mxu0 0.0
    %309 = vmatprep.subr.mxu0 0.0
    %310 = vmatpush2.xpose.msra.mxu0 0.0
    %311 = vmatprep.subr.mxu0 0.0
    %312 = vmatpush2.xpose.msra.mxu0 0.0
    %313 = vmatprep.subr.mxu0 0.0
    %314 = vmatpush2.xpose.msra.mxu0 0.0
    %315 = vmatprep.subr.mxu0 0.0
    %316 = vmatpush2.xpose.msra.mxu0 0.0
    %317 = vmatprep.subr.mxu0 0.0
    %318 = vmatpush2.xpose.msra.mxu0 0.0
    %319 = vmatprep.subr.mxu0 0.0
    %320 = vmatpush2.xpose.msra.mxu0 0.0
    %321 = vmatprep.mubr.f32.mxu0 0.0
    %322 = vmatmul.mubr.f32.gmra.mxu0 %v256
    %v323 = vpop.f32.mrf.mxu0
    %v324 = vadd.f32 0.0, %v323
    %v325 = vpop.f32.mrf.mxu0
    %326 = vdwg.mxu0
    %327 = vst [vmem:[#allocation2] sm:$0x1] %v324
    // Predicated region
    $region18: #{tpu_custom_call.1} parent=1 // pred_check
      _
    $region19: #{tpu_custom_call.1} parent=1 // pred_check_branch
      %329 = sbr.rel (0) target = $region21
    $region20: #{tpu_custom_call.1} parent=1 // pred_region
      %s331 = ssub.s32 16, 16
      %332 = vsyncadd [#allocation3], %s331
      %s334 = sshll.u32 [#allocation2], 4
      %s335 = int_to_ptr.vmem [resolvable:$true] %s334
      %337 = dma.vmem_to_hbm [thread:$0]  %s335, 16, %s4, [#allocation3]
    $region21: #{tpu_custom_call.1} parent=1 // pred_fallthru
      _
    // Predicated region
    $region22: #{tpu_custom_call.1} parent=1 // pred_check
      _
    $region23: #{tpu_custom_call.1} parent=1 // pred_check_branch
      %339 = sbr.rel (0) target = $region25
    $region24: #{tpu_custom_call.1} parent=1 // pred_region
      %340 = dma.done [#allocation3], 16
    $region25: #{tpu_custom_call.1} parent=1 // pred_fallthru
      _
    %341 = vsyncpa [#allocation3], 1

</llo_original>
